<compile_context>
chip_gen: v6e
topology: v6e:2x2x1
jax: 0.10.0
libtpu: 0.0.40
codegen_flags: <defaults>
</compile_context>

<pallas_src>
import functools

import jax
import jax.numpy as jnp
from jax.experimental import pallas as pl
from jax.experimental.pallas import tpu as pltpu


NEG_SLOPE = 0.01  # PyTorch default for F.leaky_relu
LANE = 128
SUBLANE = 8


def _round_up(x, m):
    return ((x + m - 1) // m) * m


def _leaky_relu(y):
    return jnp.where(y > 0, y, NEG_SLOPE * y)


def _fused_mlp_kernel(x_ref, w1_ref, b1_ref, w2_ref, b2_ref, w3_ref, b3_ref, o_ref):
    """One batch tile: 3 x (matmul on MXU, f32 accumulate, f32 bias+leaky_relu).

    Activations are cast to the weight dtype (bf16 when prepare_params stored
    bf16 weights) right before the dot; intermediates stay in VMEM/vregs.
    """

    def layer(a, w_ref, b_ref):
        y = jnp.dot(
            a.astype(w_ref.dtype), w_ref[...], preferred_element_type=jnp.float32
        ) + b_ref[...]
        return _leaky_relu(y)

    h = layer(x_ref[...], w1_ref, b1_ref)   # [TM, D1]
    h = layer(h, w2_ref, b2_ref)            # [TM, D2]
    y = layer(h, w3_ref, b3_ref)            # [TM, Dout_p]
    o_ref[...] = y.astype(o_ref.dtype)


def _fused_mlp_call(x, w1, b1, w2, b2, w3, b3, *, tm):
    B, Din = x.shape
    D1 = w1.shape[1]
    D2 = w2.shape[1]
    Dout_p = w3.shape[1]
    grid = (pl.cdiv(B, tm),)  # partial last block handled by Pallas masking
    return pl.pallas_call(
        _fused_mlp_kernel,
        out_shape=jax.ShapeDtypeStruct((B, Dout_p), jnp.float32),
        grid=grid,
        in_specs=[
            pl.BlockSpec((tm, Din), lambda i: (i, 0)),      # batch tile of activations
            pl.BlockSpec((Din, D1), lambda i: (0, 0)),      # weights: VMEM-resident
            pl.BlockSpec((1, D1), lambda i: (0, 0)),
            pl.BlockSpec((D1, D2), lambda i: (0, 0)),
            pl.BlockSpec((1, D2), lambda i: (0, 0)),
            pl.BlockSpec((D2, Dout_p), lambda i: (0, 0)),
            pl.BlockSpec((1, Dout_p), lambda i: (0, 0)),
        ],
        out_specs=pl.BlockSpec((tm, Dout_p), lambda i: (i, 0)),
        compiler_params=pltpu.CompilerParams(
            dimension_semantics=("parallel",),
            # Footprint is < 4 MiB even at TM=1024; cap well under v7x's scoped VMEM.
            vmem_limit_bytes=32 * 1024 * 1024,
        ),
    )(x, w1, b1, w2, b2, w3, b3)


def _pick_tm(B):
    """Largest multiple-of-8 batch tile that still gives >= 2 grid steps when B
    is splittable (keeps both v7x TensorCores busy), capped at 1024."""
    if B <= SUBLANE:
        return SUBLANE
    half = _round_up(pl.cdiv(B, 2), SUBLANE)
    return int(min(1024, half))


def prepare_params(params, *, matmul_dtype=jnp.bfloat16):
    """One-time parameter prep (NOT per forward call):
      * pad W3/b3 columns to a lane-dense multiple of 128 (padding cols are 0,
        so leaky_relu(0)=0 there; sliced off after the kernel),
      * reshape biases to (1, D) rows (single vreg-broadcast add),
      * store weights in matmul_dtype (bf16 halves HBM/VMEM weight bytes and
        feeds the MXU natively).  Biases stay f32.
    Returns (prepped_params, n_output)."""
    (w1, b1), (w2, b2), (w3, b3) = params
    dout = w3.shape[1]
    dout_p = _round_up(dout, LANE)
    if dout_p != dout:
        w3 = jnp.pad(w3, ((0, 0), (0, dout_p - dout)))
        b3 = jnp.pad(b3, ((0, dout_p - dout),))
    prepped = tuple(
        (w.astype(matmul_dtype), b.reshape(1, -1).astype(jnp.float32))
        for (w, b) in ((w1, b1), (w2, b2), (w3, b3))
    )
    return prepped, dout


@functools.partial(jax.jit, static_argnames=("n_output",))
def mlp_forward(x, prepped_params, n_output):
    """Fused MLP forward.  x: [B, n_input] f32; prepped_params from prepare_params."""
    (w1, b1), (w2, b2), (w3, b3) = prepped_params
    B = x.shape[0]
    tm = _pick_tm(B)
    if B < SUBLANE:  # only tiny batches get padded; B >= 8 uses partial blocks
        x = jnp.pad(x, ((0, SUBLANE - B), (0, 0)))
    out = _fused_mlp_call(x, w1, b1, w2, b2, w3, b3, tm=tm)
    # Column slice off the lane padding (and row slice only if B < 8).
    return out[:B, :n_output]


def init_mlp_params(key, n_input, n_output, layers_dim=(256, 256)):
    """Deterministic PyTorch-style (uniform +-1/sqrt(fan_in)) init.

    Returns list of (W_transposed [Din, Dout], b [Dout]) in forward order, f32.
    """
    dims = [n_input] + list(layers_dim) + [n_output]
    params = []
    for i in range(len(dims) - 1):
        din, dout = dims[i], dims[i + 1]
        key, kw, kb = jax.random.split(key, 3)
        bound = 1.0 / jnp.sqrt(jnp.float32(din))
        # PyTorch stores W as [out, in]; we keep the transposed [in, out] layout.
        w_t = jax.random.uniform(kw, (din, dout), jnp.float32, -bound, bound)
        b = jax.random.uniform(kb, (dout,), jnp.float32, -bound, bound)
        params.append((w_t, b))
    return params


def mlp_reference(x, params, matmul_dtype=jnp.float32):
    """Pure-JAX reference (leaky_relu after every layer).  matmul_dtype=bf16 mimics
    the kernel's MXU input precision (accumulation stays f32)."""
    h = x
    for (w_t, b) in params:
        y = jnp.dot(
            h.astype(matmul_dtype),
            w_t.astype(matmul_dtype),
            preferred_element_type=jnp.float32,
        ) + b
        h = jnp.where(y > 0, y, NEG_SLOPE * y)
    return h


if __name__ == "__main__":
    key = jax.random.PRNGKey(0)
    k_in, k_in2, k_p = jax.random.split(key, 3)

    n_input = 32
    n_output = 64
    layers_dim = (256, 256)

    params = init_mlp_params(k_p, n_input, n_output, layers_dim)
    prepped, dout = prepare_params(params)  # one-time prep (bf16 weights, padded W3)
    assert dout == n_output

    # --- small batch (single tile) ---
    batch = 8
    x = jax.random.normal(k_in, (batch, n_input), jnp.float32)
    out = jax.block_until_ready(mlp_forward(x, prepped, n_output))
    assert out.shape == (batch, n_output), out.shape
    ref_bf16 = mlp_reference(x, params, matmul_dtype=jnp.bfloat16)
    ref_f32 = mlp_reference(x, params, matmul_dtype=jnp.float32)
    assert jnp.allclose(out, ref_bf16, atol=1e-3, rtol=1e-3), "mismatch vs bf16 reference"
    assert jnp.allclose(out, ref_f32, atol=5e-2, rtol=5e-2), "mismatch vs f32 reference"

    # --- larger batch: exercises >=2 grid steps (v7x dual-TC) and a partial last block ---
    batch2 = 300
    x2 = jax.random.normal(k_in2, (batch2, n_input), jnp.float32)
    out2 = jax.block_until_ready(mlp_forward(x2, prepped, n_output))
    assert out2.shape == (batch2, n_output), out2.shape
    ref2_bf16 = mlp_reference(x2, params, matmul_dtype=jnp.bfloat16)
    ref2_f32 = mlp_reference(x2, params, matmul_dtype=jnp.float32)
    assert jnp.allclose(out2, ref2_bf16, atol=1e-3, rtol=1e-3), "mismatch vs bf16 reference (B=300)"
    assert jnp.allclose(out2, ref2_f32, atol=5e-2, rtol=5e-2), "mismatch vs f32 reference (B=300)"

    print("KERNEL_OK")
</pallas_src>

<mosaic_0001>
module attributes {stable_mosaic.version = 11 : i64} {
  func.func @_fused_mlp_kernel(%arg0: i32, %arg1: memref<8x32xf32, #tpu.memory_space<vmem>>, %arg2: memref<32x256xbf16, #tpu.memory_space<vmem>>, %arg3: memref<1x256xf32, #tpu.memory_space<vmem>>, %arg4: memref<256x256xbf16, #tpu.memory_space<vmem>>, %arg5: memref<1x256xf32, #tpu.memory_space<vmem>>, %arg6: memref<256x128xbf16, #tpu.memory_space<vmem>>, %arg7: memref<1x128xf32, #tpu.memory_space<vmem>>, %arg8: memref<8x128xf32, #tpu.memory_space<vmem>>) attributes {dimension_semantics = [#tpu.dimension_semantics<parallel>], iteration_bounds = array<i64: 1>, scalar_prefetch = 0 : i64, scratch_operands = 0 : i64, tpu.core_type = #tpu.core_type<tc>, window_params = [{transform_indices = @transform_0, window_bounds = array<i64: 8, 32>}, {pipeline_mode = #tpu.pipeline_mode<synchronous>, transform_indices = @transform_1, window_bounds = array<i64: 32, 256>}, {pipeline_mode = #tpu.pipeline_mode<synchronous>, transform_indices = @transform_2, window_bounds = array<i64: 1, 256>}, {pipeline_mode = #tpu.pipeline_mode<synchronous>, transform_indices = @transform_3, window_bounds = array<i64: 256, 256>}, {pipeline_mode = #tpu.pipeline_mode<synchronous>, transform_indices = @transform_4, window_bounds = array<i64: 1, 256>}, {pipeline_mode = #tpu.pipeline_mode<synchronous>, transform_indices = @transform_5, window_bounds = array<i64: 256, 128>}, {pipeline_mode = #tpu.pipeline_mode<synchronous>, transform_indices = @transform_6, window_bounds = array<i64: 1, 128>}, {transform_indices = @transform_7, window_bounds = array<i64: 8, 128>}]} {
    %c0 = arith.constant 0 : index
    %c0_0 = arith.constant 0 : index
    %0 = vector.load %arg1[%c0, %c0_0] : memref<8x32xf32, #tpu.memory_space<vmem>>, vector<8x32xf32>
    %1 = arith.truncf %0 : vector<8x32xf32> to vector<8x32xbf16>
    %c0_1 = arith.constant 0 : index
    %c0_2 = arith.constant 0 : index
    %2 = vector.load %arg2[%c0_1, %c0_2] : memref<32x256xbf16, #tpu.memory_space<vmem>>, vector<32x256xbf16>
    %cst = arith.constant dense<0.000000e+00> : vector<8x256xf32>
    %3 = tpu.matmul %1, %2, %cst {dimension_numbers = #tpu.dot_dimension_numbers<[1], [0], [0], [1], [0, 0, 1, 1], [], []>} : vector<8x32xbf16>, vector<32x256xbf16>, vector<8x256xf32> -> vector<8x256xf32>
    %c0_3 = arith.constant 0 : index
    %c0_4 = arith.constant 0 : index
    %4 = vector.load %arg3[%c0_3, %c0_4] : memref<1x256xf32, #tpu.memory_space<vmem>>, vector<1x256xf32>
    %5 = vector.broadcast %4 : vector<1x256xf32> to vector<8x256xf32>
    %6 = arith.addf %3, %5 : vector<8x256xf32>
    %cst_5 = arith.constant 0.000000e+00 : f32
    %7 = vector.broadcast %cst_5 : f32 to vector<8x256xf32>
    %8 = arith.cmpf ogt, %6, %7 : vector<8x256xf32>
    %cst_6 = arith.constant 0.00999999977 : f32
    %9 = vector.broadcast %cst_6 : f32 to vector<8x256xf32>
    %10 = arith.mulf %9, %6 : vector<8x256xf32>
    %11 = arith.select %8, %6, %10 : vector<8x256xi1>, vector<8x256xf32>
    %12 = arith.truncf %11 : vector<8x256xf32> to vector<8x256xbf16>
    %c0_7 = arith.constant 0 : index
    %c0_8 = arith.constant 0 : index
    %13 = vector.load %arg4[%c0_7, %c0_8] : memref<256x256xbf16, #tpu.memory_space<vmem>>, vector<256x256xbf16>
    %cst_9 = arith.constant dense<0.000000e+00> : vector<8x256xf32>
    %14 = tpu.matmul %12, %13, %cst_9 {dimension_numbers = #tpu.dot_dimension_numbers<[1], [0], [0], [1], [0, 0, 1, 1], [], []>} : vector<8x256xbf16>, vector<256x256xbf16>, vector<8x256xf32> -> vector<8x256xf32>
    %c0_10 = arith.constant 0 : index
    %c0_11 = arith.constant 0 : index
    %15 = vector.load %arg5[%c0_10, %c0_11] : memref<1x256xf32, #tpu.memory_space<vmem>>, vector<1x256xf32>
    %16 = vector.broadcast %15 : vector<1x256xf32> to vector<8x256xf32>
    %17 = arith.addf %14, %16 : vector<8x256xf32>
    %cst_12 = arith.constant 0.000000e+00 : f32
    %18 = vector.broadcast %cst_12 : f32 to vector<8x256xf32>
    %19 = arith.cmpf ogt, %17, %18 : vector<8x256xf32>
    %cst_13 = arith.constant 0.00999999977 : f32
    %20 = vector.broadcast %cst_13 : f32 to vector<8x256xf32>
    %21 = arith.mulf %20, %17 : vector<8x256xf32>
    %22 = arith.select %19, %17, %21 : vector<8x256xi1>, vector<8x256xf32>
    %23 = arith.truncf %22 : vector<8x256xf32> to vector<8x256xbf16>
    %c0_14 = arith.constant 0 : index
    %c0_15 = arith.constant 0 : index
    %24 = vector.load %arg6[%c0_14, %c0_15] : memref<256x128xbf16, #tpu.memory_space<vmem>>, vector<256x128xbf16>
    %cst_16 = arith.constant dense<0.000000e+00> : vector<8x128xf32>
    %25 = tpu.matmul %23, %24, %cst_16 {dimension_numbers = #tpu.dot_dimension_numbers<[1], [0], [0], [1], [0, 0, 1, 1], [], []>} : vector<8x256xbf16>, vector<256x128xbf16>, vector<8x128xf32> -> vector<8x128xf32>
    %c0_17 = arith.constant 0 : index
    %c0_18 = arith.constant 0 : index
    %26 = vector.load %arg7[%c0_17, %c0_18] : memref<1x128xf32, #tpu.memory_space<vmem>>, vector<1x128xf32>
    %27 = vector.broadcast %26 : vector<1x128xf32> to vector<8x128xf32>
    %28 = arith.addf %25, %27 : vector<8x128xf32>
    %cst_19 = arith.constant 0.000000e+00 : f32
    %29 = vector.broadcast %cst_19 : f32 to vector<8x128xf32>
    %30 = arith.cmpf ogt, %28, %29 : vector<8x128xf32>
    %cst_20 = arith.constant 0.00999999977 : f32
    %31 = vector.broadcast %cst_20 : f32 to vector<8x128xf32>
    %32 = arith.mulf %31, %28 : vector<8x128xf32>
    %33 = arith.select %30, %28, %32 : vector<8x128xi1>, vector<8x128xf32>
    %c0_21 = arith.constant 0 : index
    %c0_22 = arith.constant 0 : index
    %34 = vector.load %arg8[%c0_21, %c0_22] : memref<8x128xf32, #tpu.memory_space<vmem>>, vector<8x128xf32>
    tpu.vector_store %arg8[%c0_21, %c0_22], %33 {strides = array<i32>} : memref<8x128xf32, #tpu.memory_space<vmem>>, vector<8x128xf32>,
    return
  }
  func.func @transform_0(%arg0: i32) -> (i32, i32) {
    %c0_i32 = arith.constant 0 : i32
    %c0_i32_0 = arith.constant 0 : i32
    return %arg0, %c0_i32 : i32, i32
  }
  func.func @transform_1(%arg0: i32) -> (i32, i32) {
    %c0_i32 = arith.constant 0 : i32
    %c0_i32_0 = arith.constant 0 : i32
    %c0_i32_1 = arith.constant 0 : i32
    return %c0_i32, %c0_i32_0 : i32, i32
  }
  func.func @transform_2(%arg0: i32) -> (i32, i32) {
    %c0_i32 = arith.constant 0 : i32
    %c0_i32_0 = arith.constant 0 : i32
    %c0_i32_1 = arith.constant 0 : i32
    return %c0_i32, %c0_i32_0 : i32, i32
  }
  func.func @transform_3(%arg0: i32) -> (i32, i32) {
    %c0_i32 = arith.constant 0 : i32
    %c0_i32_0 = arith.constant 0 : i32
    %c0_i32_1 = arith.constant 0 : i32
    return %c0_i32, %c0_i32_0 : i32, i32
  }
  func.func @transform_4(%arg0: i32) -> (i32, i32) {
    %c0_i32 = arith.constant 0 : i32
    %c0_i32_0 = arith.constant 0 : i32
    %c0_i32_1 = arith.constant 0 : i32
    return %c0_i32, %c0_i32_0 : i32, i32
  }
  func.func @transform_5(%arg0: i32) -> (i32, i32) {
    %c0_i32 = arith.constant 0 : i32
    %c0_i32_0 = arith.constant 0 : i32
    %c0_i32_1 = arith.constant 0 : i32
    return %c0_i32, %c0_i32_0 : i32, i32
  }
  func.func @transform_6(%arg0: i32) -> (i32, i32) {
    %c0_i32 = arith.constant 0 : i32
    %c0_i32_0 = arith.constant 0 : i32
    %c0_i32_1 = arith.constant 0 : i32
    return %c0_i32, %c0_i32_0 : i32, i32
  }
  func.func @transform_7(%arg0: i32) -> (i32, i32) {
    %c0_i32 = arith.constant 0 : i32
    %c0_i32_0 = arith.constant 0 : i32
    return %arg0, %c0_i32 : i32, i32
  }
}

</mosaic_0001>

<llo_original>
// kernel: mlp_forward.1
$region0: #{mlp_forward.1}
  #allocation0 [shape = 'u32[]', space=smem, size = 0x4, offset = 0x4, fixed_abs, tag = 'smem constant byte address 0x4 - core index']
  #allocation1 [shape = 'u32[144,128]{1,0:T(1,128)}', space=vmem, size = 0x12000, scoped, tag = 'internal scratch']
  %s0 = inlined_call_operand.hbm [shape: f32[8,32], index: 0, kind: input, shape index: {}]
  %s1 = inlined_call_operand.hbm [shape: bf16[32,256], index: 1, kind: input, shape index: {}]
  %s2 = inlined_call_operand.vmem [shape: f32[1,256], index: 2, kind: input, shape index: {}]
  %s3 = inlined_call_operand.hbm [shape: bf16[256,256], index: 3, kind: input, shape index: {}]
  %s4 = inlined_call_operand.vmem [shape: f32[1,256], index: 4, kind: input, shape index: {}]
  %s5 = inlined_call_operand.hbm [shape: bf16[256,128], index: 5, kind: input, shape index: {}]
  %s6 = inlined_call_operand.vmem [shape: f32[1,128], index: 6, kind: input, shape index: {}]
  %s7 = inlined_call_operand.hbm [shape: f32[8,128], index: 7, kind: output, shape index: {}]
  %s8 = sld [smem:[#allocation0]]
  $region54: #{mlp_forward.1} parent=0
    _
  %s10 = ssub.s32 1, %s8
  %s11 = scalar_select 0, %s10, %s8
  $region1: #{mlp_forward.1} parent=0
    #allocation2 [shape = 'u8[4096]{0}', space=vmem, size = 0x1000, scoped, tag = 'input window, operand 0, single buffered']
    #allocation3 [shape = 's32[1]{0}', space=sflag, size = 0x4, scoped, tag = 'scoped memory for mlp_forward.1']
    #allocation4 [shape = 's32[1]{0}', space=sflag, size = 0x4, scoped, tag = 'scoped memory for mlp_forward.1']
    #allocation5 [shape = 'u8[16384]{0}', space=vmem, size = 0x4000, scoped, tag = 'input window, operand 1, single buffered']
    #allocation6 [shape = 's32[1]{0}', space=sflag, size = 0x4, scoped, tag = 'scoped memory for mlp_forward.1']
    #allocation7 [shape = 'u8[131072]{0}', space=vmem, size = 0x20000, scoped, tag = 'input window, operand 3, single buffered']
    #allocation8 [shape = 'u8[65536]{0}', space=vmem, size = 0x10000, scoped, tag = 'input window, operand 5, single buffered']
    #allocation9 [shape = 's32[1]{0}', space=sflag, size = 0x4, scoped, tag = 'scoped memory for mlp_forward.1']
    #allocation10 [shape = 'u8[4096]{0}', space=vmem, size = 0x1000, scoped, tag = 'output window, operand 0, single buffered']
    %12 = vsyncpa [#allocation3], 0
    %13 = vsyncpa [#allocation6], 0
    %14 = vsyncpa [#allocation9], 0
    %15 = vsyncpa [#allocation4], 0
    // Predicated region
    $region2: #{mlp_forward.1} parent=1 // pred_check
      _
    $region3: #{mlp_forward.1} parent=1 // pred_check_branch
      %17 = sbr.rel (0) target = $region5
    $region4: #{mlp_forward.1} parent=1 // pred_region
      %s19 = ssub.s32 128, 128
      %20 = vsyncadd [#allocation3], %s19
      %s22 = sshll.u32 [#allocation2], 4
      %s23 = int_to_ptr.vmem [resolvable:$true] %s22
      %25 = dma.hbm_to_vmem [thread:$0]  %s0, 128, %s23, [#allocation3]
    $region5: #{mlp_forward.1} parent=1 // pred_fallthru
      _
    // Predicated region
    $region6: #{mlp_forward.1} parent=1 // pred_check
      _
    $region7: #{mlp_forward.1} parent=1 // pred_check_branch
      %27 = sbr.rel (0) target = $region9
    $region8: #{mlp_forward.1} parent=1 // pred_region
      %s29 = ssub.s32 512, 512
      %30 = vsyncadd [#allocation6], %s29
      %s31 = sshll.u32 [#allocation5], 4
      %s32 = int_to_ptr.vmem [resolvable:$true] %s31
      %37 = dma.hbm_to_vmem [thread:$0]  %s1, 512, %s32, [#allocation6], 128, 128, 8
    $region9: #{mlp_forward.1} parent=1 // pred_fallthru
      _
    // Predicated region
    $region10: #{mlp_forward.1} parent=1 // pred_check
      _
    $region11: #{mlp_forward.1} parent=1 // pred_check_branch
      %39 = sbr.rel (0) target = $region13
    $region12: #{mlp_forward.1} parent=1 // pred_region
      _
    $region13: #{mlp_forward.1} parent=1 // pred_fallthru
      _
    // Predicated region
    $region14: #{mlp_forward.1} parent=1 // pred_check
      _
    $region15: #{mlp_forward.1} parent=1 // pred_check_branch
      %41 = sbr.rel (0) target = $region17
    $region16: #{mlp_forward.1} parent=1 // pred_region
      %s43 = ssub.s32 4096, 4096
      %44 = vsyncadd [#allocation6], %s43
      %s45 = sshll.u32 [#allocation7], 4
      %s46 = int_to_ptr.vmem [resolvable:$true] %s45
      %51 = dma.hbm_to_vmem [thread:$0]  %s3, 4096, %s46, [#allocation6], 128, 128, 8
    $region17: #{mlp_forward.1} parent=1 // pred_fallthru
      _
    // Predicated region
    $region18: #{mlp_forward.1} parent=1 // pred_check
      _
    $region19: #{mlp_forward.1} parent=1 // pred_check_branch
      %53 = sbr.rel (0) target = $region21
    $region20: #{mlp_forward.1} parent=1 // pred_region
      _
    $region21: #{mlp_forward.1} parent=1 // pred_fallthru
      _
    // Predicated region
    $region22: #{mlp_forward.1} parent=1 // pred_check
      _
    $region23: #{mlp_forward.1} parent=1 // pred_check_branch
      %55 = sbr.rel (0) target = $region25
    $region24: #{mlp_forward.1} parent=1 // pred_region
      %s57 = ssub.s32 2048, 2048
      %58 = vsyncadd [#allocation9], %s57
      %s59 = sshll.u32 [#allocation8], 4
      %s60 = int_to_ptr.vmem [resolvable:$true] %s59
      %65 = dma.hbm_to_vmem [thread:$0]  %s5, 2048, %s60, [#allocation9], 64, 64, 4
    $region25: #{mlp_forward.1} parent=1 // pred_fallthru
      _
    // Predicated region
    $region26: #{mlp_forward.1} parent=1 // pred_check
      _
    $region27: #{mlp_forward.1} parent=1 // pred_check_branch
      %67 = sbr.rel (0) target = $region29
    $region28: #{mlp_forward.1} parent=1 // pred_region
      _
    $region29: #{mlp_forward.1} parent=1 // pred_fallthru
      _
    // Predicated region
    $region30: #{mlp_forward.1} parent=1 // pred_check
      _
    $region31: #{mlp_forward.1} parent=1 // pred_check_branch
      %69 = sbr.rel (0) target = $region33
    $region32: #{mlp_forward.1} parent=1 // pred_region
      %70 = dma.done [#allocation3], 128
    $region33: #{mlp_forward.1} parent=1 // pred_fallthru
      _
    // Predicated region
    $region34: #{mlp_forward.1} parent=1 // pred_check
      _
    $region35: #{mlp_forward.1} parent=1 // pred_check_branch
      %72 = sbr.rel (0) target = $region37
    $region36: #{mlp_forward.1} parent=1 // pred_region
      %73 = dma.done [#allocation6], 512
    $region37: #{mlp_forward.1} parent=1 // pred_fallthru
      _
    // Predicated region
    $region38: #{mlp_forward.1} parent=1 // pred_check
      _
    $region39: #{mlp_forward.1} parent=1 // pred_check_branch
      %75 = sbr.rel (0) target = $region41
    $region40: #{mlp_forward.1} parent=1 // pred_region
      %76 = dma.done [#allocation6], 4096
    $region41: #{mlp_forward.1} parent=1 // pred_fallthru
      _
    // Predicated region
    $region42: #{mlp_forward.1} parent=1 // pred_check
      _
    $region43: #{mlp_forward.1} parent=1 // pred_check_branch
      %78 = sbr.rel (0) target = $region45
    $region44: #{mlp_forward.1} parent=1 // pred_region
      %79 = dma.done [#allocation9], 2048
    $region45: #{mlp_forward.1} parent=1 // pred_fallthru
      _
    %v81 = vld [vmem:[#allocation2] sm:$0xff]
    %v82 = vpack.c.bf16 %v81, %v81
    %v83 = vld [vmem:[#allocation5] sm:$0xff]
    %v84 = vld [vmem:[#allocation5 + $0x8] sm:$0xff]
    %v85 = vld [vmem:[#allocation5 + $0x10] sm:$0xff]
    %v86 = vld [vmem:[#allocation5 + $0x18] sm:$0xff]
    %v87 = vld [vmem:[%s2] sm:$0x3]
    %v89 = vlaneseq
    %v90 = vshrl.u32 %v89, 7
    %v91 = vsub.s32 0, %v90
    %v92 = vrot.slane %v87, %v91
    %v93 = vlaneseq
    %v94 = vshrl.u32 %v93, 7
    %v95 = vsub.s32 1, %v94
    %v96 = vrot.slane %v87, %v95
    %v103 = vunpack.c.l.b16 %v83
    %v104 = vunpack.c.h.b16 %v83
    %v105 = vunpack.c.l.b16 %v84
    %v106 = vunpack.c.h.b16 %v84
    %v107 = vunpack.c.l.b16 %v85
    %v108 = vunpack.c.h.b16 %v85
    %v109 = vunpack.c.l.b16 %v86
    %v110 = vunpack.c.h.b16 %v86
    %v111 = vpack.c.b16 %v105, %v103
    %v112 = vpack.c.b16 %v106, %v104
    %v113 = vpack.c.b16 %v109, %v107
    %v114 = vpack.c.b16 %v110, %v108
    %vm119 = vcmask 261120
    %v121 = vsel %vm119, %v82, 0
    %123 = vmatprep.subr.bf16.mxu0 0
    %124 = vmatpush1.bf16.msra.mxu0 0
    %125 = vmatprep.subr.bf16.mxu0 0
    %126 = vmatpush1.bf16.msra.mxu0 0
    %127 = vmatprep.subr.bf16.mxu0 0
    %128 = vmatpush1.bf16.msra.mxu0 0
    %129 = vmatprep.subr.bf16.mxu0 0
    %130 = vmatpush1.bf16.msra.mxu0 0
    %131 = vmatprep.subr.bf16.mxu0 0
    %132 = vmatpush1.bf16.msra.mxu0 0
    %133 = vmatprep.subr.bf16.mxu0 0
    %134 = vmatpush1.bf16.msra.mxu0 0
    %135 = vmatprep.subr.bf16.mxu0 %v114
    %136 = vmatpush1.bf16.msra.mxu0 %v113
    %137 = vmatprep.subr.bf16.mxu0 %v112
    %138 = vmatpush1.bf16.msra.mxu0 %v111
    %139 = vmatprep.subr.bf16.mxu0 0
    %140 = vmatpush2.bf16.msra.mxu0 0
    %141 = vmatprep.subr.bf16.mxu0 0
    %142 = vmatpush2.bf16.msra.mxu0 0
    %143 = vmatprep.subr.bf16.mxu0 0
    %144 = vmatpush2.bf16.msra.mxu0 0
    %145 = vmatprep.subr.bf16.mxu0 0
    %146 = vmatpush2.bf16.msra.mxu0 0
    %147 = vmatprep.subr.bf16.mxu0 0
    %148 = vmatpush2.bf16.msra.mxu0 0
    %149 = vmatprep.subr.bf16.mxu0 0
    %150 = vmatpush2.bf16.msra.mxu0 0
    %151 = vmatprep.subr.bf16.mxu0 0
    %152 = vmatpush2.bf16.msra.mxu0 0
    %153 = vmatprep.subr.bf16.mxu0 0
    %154 = vmatpush2.bf16.msra.mxu0 0
    %155 = vmatprep.mubr.bf16.mxu0 0
    %156 = vmatmul.mubr.bf16.gmra.mxu0 %v121
    %v157 = vpop.f32.mrf.mxu0
    %v158 = vadd.f32 %v92, %v157
    %v159 = vpop.f32.mrf.mxu0
    %v160 = vadd.f32 %v96, %v159
    %v161 = vpop.f32.mrf.mxu0
    %v162 = vpop.f32.mrf.mxu0
    %163 = vdwg.mxu0
    %vm164 = vcmp.gt.f32.partialorder %v158, 0.0
    %vm165 = vcmp.gt.f32.partialorder %v160, 0.0
    %v166 = vmul.f32 %v158, 0.01
    %v167 = vmul.f32 %v160, 0.01
    %v168 = vsel %vm164, %v158, %v166
    %v169 = vsel %vm165, %v160, %v167
    %v170 = vpack.c.bf16 %v168, %v168
    %v171 = vpack.c.bf16 %v169, %v169
    %v172 = vld [vmem:[#allocation7] sm:$0xff]
    %v173 = vld [vmem:[#allocation7 + $0x8] sm:$0xff]
    %v174 = vld [vmem:[#allocation7 + $0x10] sm:$0xff]
    %v175 = vld [vmem:[#allocation7 + $0x18] sm:$0xff]
    %v176 = vld [vmem:[#allocation7 + $0x20] sm:$0xff]
    %v177 = vld [vmem:[#allocation7 + $0x28] sm:$0xff]
    %v178 = vld [vmem:[#allocation7 + $0x30] sm:$0xff]
    %v179 = vld [vmem:[#allocation7 + $0x38] sm:$0xff]
    %v180 = vld [vmem:[#allocation7 + $0x40] sm:$0xff]
    %v181 = vld [vmem:[#allocation7 + $0x48] sm:$0xff]
    %v182 = vld [vmem:[#allocation7 + $0x50] sm:$0xff]
    %v183 = vld [vmem:[#allocation7 + $0x58] sm:$0xff]
    %v184 = vld [vmem:[#allocation7 + $0x60] sm:$0xff]
    %v185 = vld [vmem:[#allocation7 + $0x68] sm:$0xff]
    %v186 = vld [vmem:[#allocation7 + $0x70] sm:$0xff]
    %v187 = vld [vmem:[#allocation7 + $0x78] sm:$0xff]
    %v188 = vld [vmem:[#allocation7 + $0x80] sm:$0xff]
    %v189 = vld [vmem:[#allocation7 + $0x88] sm:$0xff]
    %v190 = vld [vmem:[#allocation7 + $0x90] sm:$0xff]
    %v191 = vld [vmem:[#allocation7 + $0x98] sm:$0xff]
    %v192 = vld [vmem:[#allocation7 + $0xa0] sm:$0xff]
    %v193 = vld [vmem:[#allocation7 + $0xa8] sm:$0xff]
    %v194 = vld [vmem:[#allocation7 + $0xb0] sm:$0xff]
    %v195 = vld [vmem:[#allocation7 + $0xb8] sm:$0xff]
    %v196 = vld [vmem:[#allocation7 + $0xc0] sm:$0xff]
    %v197 = vld [vmem:[#allocation7 + $0xc8] sm:$0xff]
    %v198 = vld [vmem:[#allocation7 + $0xd0] sm:$0xff]
    %v199 = vld [vmem:[#allocation7 + $0xd8] sm:$0xff]
    %v200 = vld [vmem:[#allocation7 + $0xe0] sm:$0xff]
    %v201 = vld [vmem:[#allocation7 + $0xe8] sm:$0xff]
    %v202 = vld [vmem:[#allocation7 + $0xf0] sm:$0xff]
    %v203 = vld [vmem:[#allocation7 + $0xf8] sm:$0xff]
    %v204 = vld [vmem:[%s4] sm:$0x3]
    %v206 = vlaneseq
    %v207 = vshrl.u32 %v206, 7
    %v208 = vsub.s32 0, %v207
    %v209 = vrot.slane %v204, %v208
    %v210 = vlaneseq
    %v211 = vshrl.u32 %v210, 7
    %v212 = vsub.s32 1, %v211
    %v213 = vrot.slane %v204, %v212
    %v248 = vunpack.c.l.b16 %v172
    %v249 = vunpack.c.h.b16 %v172
    %v250 = vunpack.c.l.b16 %v173
    %v251 = vunpack.c.h.b16 %v173
    %v252 = vunpack.c.l.b16 %v174
    %v253 = vunpack.c.h.b16 %v174
    %v254 = vunpack.c.l.b16 %v175
    %v255 = vunpack.c.h.b16 %v175
    %v256 = vunpack.c.l.b16 %v176
    %v257 = vunpack.c.h.b16 %v176
    %v258 = vunpack.c.l.b16 %v177
    %v259 = vunpack.c.h.b16 %v177
    %v260 = vunpack.c.l.b16 %v178
    %v261 = vunpack.c.h.b16 %v178
    %v262 = vunpack.c.l.b16 %v179
    %v263 = vunpack.c.h.b16 %v179
    %v264 = vunpack.c.l.b16 %v180
    %v265 = vunpack.c.h.b16 %v180
    %v266 = vunpack.c.l.b16 %v181
    %v267 = vunpack.c.h.b16 %v181
    %v268 = vunpack.c.l.b16 %v182
    %v269 = vunpack.c.h.b16 %v182
    %v270 = vunpack.c.l.b16 %v183
    %v271 = vunpack.c.h.b16 %v183
    %v272 = vunpack.c.l.b16 %v184
    %v273 = vunpack.c.h.b16 %v184
    %v274 = vunpack.c.l.b16 %v185
    %v275 = vunpack.c.h.b16 %v185
    %v276 = vunpack.c.l.b16 %v186
    %v277 = vunpack.c.h.b16 %v186
    %v278 = vunpack.c.l.b16 %v187
    %v279 = vunpack.c.h.b16 %v187
    %v280 = vunpack.c.l.b16 %v188
    %v281 = vunpack.c.h.b16 %v188
    %v282 = vunpack.c.l.b16 %v189
    %v283 = vunpack.c.h.b16 %v189
    %v284 = vunpack.c.l.b16 %v190
    %v285 = vunpack.c.h.b16 %v190
    %v286 = vunpack.c.l.b16 %v191
    %v287 = vunpack.c.h.b16 %v191
    %v288 = vunpack.c.l.b16 %v192
    %v289 = vunpack.c.h.b16 %v192
    %v290 = vunpack.c.l.b16 %v193
    %v291 = vunpack.c.h.b16 %v193
    %v292 = vunpack.c.l.b16 %v194
    %v293 = vunpack.c.h.b16 %v194
    %v294 = vunpack.c.l.b16 %v195
    %v295 = vunpack.c.h.b16 %v195
    %v296 = vunpack.c.l.b16 %v196
    %v297 = vunpack.c.h.b16 %v196
    %v298 = vunpack.c.l.b16 %v197
    %v299 = vunpack.c.h.b16 %v197
    %v300 = vunpack.c.l.b16 %v198
    %v301 = vunpack.c.h.b16 %v198
    %v302 = vunpack.c.l.b16 %v199
    %v303 = vunpack.c.h.b16 %v199
    %v304 = vunpack.c.l.b16 %v200
    %v305 = vunpack.c.h.b16 %v200
    %v306 = vunpack.c.l.b16 %v201
    %v307 = vunpack.c.h.b16 %v201
    %v308 = vunpack.c.l.b16 %v202
    %v309 = vunpack.c.h.b16 %v202
    %v310 = vunpack.c.l.b16 %v203
    %v311 = vunpack.c.h.b16 %v203
    %v312 = vpack.c.b16 %v250, %v248
    %v313 = vpack.c.b16 %v251, %v249
    %v314 = vpack.c.b16 %v254, %v252
    %v315 = vpack.c.b16 %v255, %v253
    %v316 = vpack.c.b16 %v258, %v256
    %v317 = vpack.c.b16 %v259, %v257
    %v318 = vpack.c.b16 %v262, %v260
    %v319 = vpack.c.b16 %v263, %v261
    %v320 = vpack.c.b16 %v266, %v264
    %v321 = vpack.c.b16 %v267, %v265
    %v322 = vpack.c.b16 %v270, %v268
    %v323 = vpack.c.b16 %v271, %v269
    %v324 = vpack.c.b16 %v274, %v272
    %v325 = vpack.c.b16 %v275, %v273
    %v326 = vpack.c.b16 %v278, %v276
    %v327 = vpack.c.b16 %v279, %v277
    %v328 = vpack.c.b16 %v282, %v280
    %v329 = vpack.c.b16 %v283, %v281
    %v330 = vpack.c.b16 %v286, %v284
    %v331 = vpack.c.b16 %v287, %v285
    %v332 = vpack.c.b16 %v290, %v288
    %v333 = vpack.c.b16 %v291, %v289
    %v334 = vpack.c.b16 %v294, %v292
    %v335 = vpack.c.b16 %v295, %v293
    %v336 = vpack.c.b16 %v298, %v296
    %v337 = vpack.c.b16 %v299, %v297
    %v338 = vpack.c.b16 %v302, %v300
    %v339 = vpack.c.b16 %v303, %v301
    %v340 = vpack.c.b16 %v306, %v304
    %v341 = vpack.c.b16 %v307, %v305
    %v342 = vpack.c.b16 %v310, %v308
    %v343 = vpack.c.b16 %v311, %v309
    %376 = vmatprep.subr.bf16.mxu0 %v327
    %377 = vmatpush1.bf16.msra.mxu0 %v326
    %378 = vmatprep.subr.bf16.mxu0 %v325
    %379 = vmatpush1.bf16.msra.mxu0 %v324
    %380 = vmatprep.subr.bf16.mxu0 %v323
    %381 = vmatpush1.bf16.msra.mxu0 %v322
    %382 = vmatprep.subr.bf16.mxu0 %v321
    %383 = vmatpush1.bf16.msra.mxu0 %v320
    %384 = vmatprep.subr.bf16.mxu0 %v319
    %385 = vmatpush1.bf16.msra.mxu0 %v318
    %386 = vmatprep.subr.bf16.mxu0 %v317
    %387 = vmatpush1.bf16.msra.mxu0 %v316
    %388 = vmatprep.subr.bf16.mxu0 %v315
    %389 = vmatpush1.bf16.msra.mxu0 %v314
    %390 = vmatprep.subr.bf16.mxu0 %v313
    %391 = vmatpush1.bf16.msra.mxu0 %v312
    %392 = vmatprep.subr.bf16.mxu0 %v343
    %393 = vmatpush2.bf16.msra.mxu0 %v342
    %394 = vmatprep.subr.bf16.mxu0 %v341
    %395 = vmatpush2.bf16.msra.mxu0 %v340
    %396 = vmatprep.subr.bf16.mxu0 %v339
    %397 = vmatpush2.bf16.msra.mxu0 %v338
    %398 = vmatprep.subr.bf16.mxu0 %v337
    %399 = vmatpush2.bf16.msra.mxu0 %v336
    %400 = vmatprep.subr.bf16.mxu0 %v335
    %401 = vmatpush2.bf16.msra.mxu0 %v334
    %402 = vmatprep.subr.bf16.mxu0 %v333
    %403 = vmatpush2.bf16.msra.mxu0 %v332
    %404 = vmatprep.subr.bf16.mxu0 %v331
    %405 = vmatpush2.bf16.msra.mxu0 %v330
    %406 = vmatprep.subr.bf16.mxu0 %v329
    %407 = vmatpush2.bf16.msra.mxu0 %v328
    %408 = vmatprep.mubr.bf16.mxu0 %v171
    %409 = vmatmul.mubr.bf16.gmra.mxu0 %v170
    %v410 = vpop.f32.mrf.mxu0
    %v411 = vadd.f32 %v209, %v410
    %v412 = vpop.f32.mrf.mxu0
    %v413 = vadd.f32 %v213, %v412
    %v414 = vpop.f32.mrf.mxu0
    %v415 = vpop.f32.mrf.mxu0
    %416 = vdwg.mxu0
    %vm417 = vcmp.gt.f32.partialorder %v411, 0.0
    %vm418 = vcmp.gt.f32.partialorder %v413, 0.0
    %v419 = vmul.f32 %v411, 0.01
    %v420 = vmul.f32 %v413, 0.01
    %v421 = vsel %vm417, %v411, %v419
    %v422 = vsel %vm418, %v413, %v420
    %v423 = vpack.c.bf16 %v421, %v421
    %v424 = vpack.c.bf16 %v422, %v422
    %v425 = vld [vmem:[#allocation8] sm:$0xf]
    %v426 = vld [vmem:[#allocation8 + $0x4] sm:$0xf]
    %v427 = vld [vmem:[#allocation8 + $0x8] sm:$0xf]
    %v428 = vld [vmem:[#allocation8 + $0xc] sm:$0xf]
    %v429 = vld [vmem:[#allocation8 + $0x10] sm:$0xf]
    %v430 = vld [vmem:[#allocation8 + $0x14] sm:$0xf]
    %v431 = vld [vmem:[#allocation8 + $0x18] sm:$0xf]
    %v432 = vld [vmem:[#allocation8 + $0x1c] sm:$0xf]
    %v433 = vld [vmem:[#allocation8 + $0x20] sm:$0xf]
    %v434 = vld [vmem:[#allocation8 + $0x24] sm:$0xf]
    %v435 = vld [vmem:[#allocation8 + $0x28] sm:$0xf]
    %v436 = vld [vmem:[#allocation8 + $0x2c] sm:$0xf]
    %v437 = vld [vmem:[#allocation8 + $0x30] sm:$0xf]
    %v438 = vld [vmem:[#allocation8 + $0x34] sm:$0xf]
    %v439 = vld [vmem:[#allocation8 + $0x38] sm:$0xf]
    %v440 = vld [vmem:[#allocation8 + $0x3c] sm:$0xf]
    %v441 = vld [vmem:[#allocation8 + $0x40] sm:$0xf]
    %v442 = vld [vmem:[#allocation8 + $0x44] sm:$0xf]
    %v443 = vld [vmem:[#allocation8 + $0x48] sm:$0xf]
    %v444 = vld [vmem:[#allocation8 + $0x4c] sm:$0xf]
    %v445 = vld [vmem:[#allocation8 + $0x50] sm:$0xf]
    %v446 = vld [vmem:[#allocation8 + $0x54] sm:$0xf]
    %v447 = vld [vmem:[#allocation8 + $0x58] sm:$0xf]
    %v448 = vld [vmem:[#allocation8 + $0x5c] sm:$0xf]
    %v449 = vld [vmem:[#allocation8 + $0x60] sm:$0xf]
    %v450 = vld [vmem:[#allocation8 + $0x64] sm:$0xf]
    %v451 = vld [vmem:[#allocation8 + $0x68] sm:$0xf]
    %v452 = vld [vmem:[#allocation8 + $0x6c] sm:$0xf]
    %v453 = vld [vmem:[#allocation8 + $0x70] sm:$0xf]
    %v454 = vld [vmem:[#allocation8 + $0x74] sm:$0xf]
    %v455 = vld [vmem:[#allocation8 + $0x78] sm:$0xf]
    %v456 = vld [vmem:[#allocation8 + $0x7c] sm:$0xf]
    %v457 = vld [vmem:[%s6] sm:$0x1]
    %v459 = vlaneseq
    %v460 = vshrl.u32 %v459, 7
    %v461 = vsub.s32 0, %v460
    %v462 = vrot.slane %v457, %v461
    %v496 = vunpack.c.l.b16 %v425
    %v497 = vunpack.c.l.b16 %v426
    %v498 = vunpack.c.l.b16 %v427
    %v499 = vunpack.c.l.b16 %v428
    %v500 = vunpack.c.l.b16 %v429
    %v501 = vunpack.c.l.b16 %v430
    %v502 = vunpack.c.l.b16 %v431
    %v503 = vunpack.c.l.b16 %v432
    %v504 = vunpack.c.l.b16 %v433
    %v505 = vunpack.c.l.b16 %v434
    %v506 = vunpack.c.l.b16 %v435
    %v507 = vunpack.c.l.b16 %v436
    %v508 = vunpack.c.l.b16 %v437
    %v509 = vunpack.c.l.b16 %v438
    %v510 = vunpack.c.l.b16 %v439
    %v511 = vunpack.c.l.b16 %v440
    %v512 = vunpack.c.l.b16 %v441
    %v513 = vunpack.c.l.b16 %v442
    %v514 = vunpack.c.l.b16 %v443
    %v515 = vunpack.c.l.b16 %v444
    %v516 = vunpack.c.l.b16 %v445
    %v517 = vunpack.c.l.b16 %v446
    %v518 = vunpack.c.l.b16 %v447
    %v519 = vunpack.c.l.b16 %v448
    %v520 = vunpack.c.l.b16 %v449
    %v521 = vunpack.c.l.b16 %v450
    %v522 = vunpack.c.l.b16 %v451
    %v523 = vunpack.c.l.b16 %v452
    %v524 = vunpack.c.l.b16 %v453
    %v525 = vunpack.c.l.b16 %v454
    %v526 = vunpack.c.l.b16 %v455
    %v527 = vunpack.c.l.b16 %v456
    %v528 = vpack.c.b16 %v497, %v496
    %v529 = vpack.c.b16 %v499, %v498
    %v530 = vpack.c.b16 %v501, %v500
    %v531 = vpack.c.b16 %v503, %v502
    %v532 = vpack.c.b16 %v505, %v504
    %v533 = vpack.c.b16 %v507, %v506
    %v534 = vpack.c.b16 %v509, %v508
    %v535 = vpack.c.b16 %v511, %v510
    %v536 = vpack.c.b16 %v513, %v512
    %v537 = vpack.c.b16 %v515, %v514
    %v538 = vpack.c.b16 %v517, %v516
    %v539 = vpack.c.b16 %v519, %v518
    %v540 = vpack.c.b16 %v521, %v520
    %v541 = vpack.c.b16 %v523, %v522
    %v542 = vpack.c.b16 %v525, %v524
    %v543 = vpack.c.b16 %v527, %v526
    %560 = vmatprep.subr.bf16.mxu0 0
    %561 = vmatpush1.bf16.msra.mxu0 %v535
    %562 = vmatprep.subr.bf16.mxu0 0
    %563 = vmatpush1.bf16.msra.mxu0 %v534
    %564 = vmatprep.subr.bf16.mxu0 0
    %565 = vmatpush1.bf16.msra.mxu0 %v533
    %566 = vmatprep.subr.bf16.mxu0 0
    %567 = vmatpush1.bf16.msra.mxu0 %v532
    %568 = vmatprep.subr.bf16.mxu0 0
    %569 = vmatpush1.bf16.msra.mxu0 %v531
    %570 = vmatprep.subr.bf16.mxu0 0
    %571 = vmatpush1.bf16.msra.mxu0 %v530
    %572 = vmatprep.subr.bf16.mxu0 0
    %573 = vmatpush1.bf16.msra.mxu0 %v529
    %574 = vmatprep.subr.bf16.mxu0 0
    %575 = vmatpush1.bf16.msra.mxu0 %v528
    %576 = vmatprep.subr.bf16.mxu0 0
    %577 = vmatpush2.bf16.msra.mxu0 %v543
    %578 = vmatprep.subr.bf16.mxu0 0
    %579 = vmatpush2.bf16.msra.mxu0 %v542
    %580 = vmatprep.subr.bf16.mxu0 0
    %581 = vmatpush2.bf16.msra.mxu0 %v541
    %582 = vmatprep.subr.bf16.mxu0 0
    %583 = vmatpush2.bf16.msra.mxu0 %v540
    %584 = vmatprep.subr.bf16.mxu0 0
    %585 = vmatpush2.bf16.msra.mxu0 %v539
    %586 = vmatprep.subr.bf16.mxu0 0
    %587 = vmatpush2.bf16.msra.mxu0 %v538
    %588 = vmatprep.subr.bf16.mxu0 0
    %589 = vmatpush2.bf16.msra.mxu0 %v537
    %590 = vmatprep.subr.bf16.mxu0 0
    %591 = vmatpush2.bf16.msra.mxu0 %v536
    %592 = vmatprep.mubr.bf16.mxu0 %v424
    %593 = vmatmul.mubr.bf16.gmra.mxu0 %v423
    %v594 = vpop.f32.mrf.mxu0
    %v595 = vadd.f32 %v462, %v594
    %v596 = vpop.f32.mrf.mxu0
    %v597 = vpop.f32.mrf.mxu0
    %v598 = vpop.f32.mrf.mxu0
    %599 = vdwg.mxu0
    %vm600 = vcmp.gt.f32.partialorder %v595, 0.0
    %v601 = vmul.f32 %v595, 0.01
    %v602 = vsel %vm600, %v595, %v601
    %603 = vst [vmem:[#allocation10] sm:$0xff] %v602
    // Predicated region
    $region46: #{mlp_forward.1} parent=1 // pred_check
      _
    $region47: #{mlp_forward.1} parent=1 // pred_check_branch
      %605 = sbr.rel (0) target = $region49
    $region48: #{mlp_forward.1} parent=1 // pred_region
      %s607 = ssub.s32 128, 128
      %608 = vsyncadd [#allocation4], %s607
      %s610 = sshll.u32 [#allocation10], 4
      %s611 = int_to_ptr.vmem [resolvable:$true] %s610
      %613 = dma.vmem_to_hbm [thread:$0]  %s611, 128, %s7, [#allocation4]
    $region49: #{mlp_forward.1} parent=1 // pred_fallthru
      _
    // Predicated region
    $region50: #{mlp_forward.1} parent=1 // pred_check
      _
    $region51: #{mlp_forward.1} parent=1 // pred_check_branch
      %615 = sbr.rel (0) target = $region53
    $region52: #{mlp_forward.1} parent=1 // pred_region
      %616 = dma.done [#allocation4], 128
    $region53: #{mlp_forward.1} parent=1 // pred_fallthru
      _
    %617 = vsyncpa [#allocation3], 1
    %618 = vsyncpa [#allocation6], 1
    %619 = vsyncpa [#allocation9], 1
    %620 = vsyncpa [#allocation4], 1

</llo_original>
